<compile_context>
chip_gen: v7x
topology: tpu7x:2x2x1
jax: 0.10.0
libtpu: 0.0.40
codegen_flags: <defaults>
</compile_context>

<pallas_src>
import jax
import jax.numpy as jnp
from jax.experimental import pallas as pl
from jax.experimental.pallas import tpu as pltpu


def dfkde_kernel(feat_ref, m_ref, meanp_ref, data_ref, bias_ref, out_ref,
                 y_sc, y2_sc, acc_sc):
    """Grid = (B tiles [parallel], N tiles [arbitrary, reduction])."""
    ni = pl.program_id(1)

    # --- per-batch-tile init: project features once, zero the accumulator -----
    @pl.when(ni == 0)
    def _init():
        y = jnp.dot(feat_ref[...], m_ref[...],
                    preferred_element_type=jnp.float32) - meanp_ref[...]   # (TB, P)
        y_sc[...] = y
        y2_sc[...] = 0.5 * jnp.sum(y * y, axis=1, keepdims=True)           # (TB, 1)
        acc_sc[...] = jnp.zeros_like(acc_sc)

    # --- accumulate this N tile: exp(y.d_j - 0.5*|y|^2 + bias_j) --------------
    cross = jax.lax.dot_general(
        y_sc[...], data_ref[...],
        dimension_numbers=(((1,), (1,)), ((), ())),
        preferred_element_type=jnp.float32)                                # (TB, TN)
    kern = jnp.exp(cross + bias_ref[...] - y2_sc[...])                     # (TB, TN)
    acc_sc[...] += jnp.sum(kern, axis=1, keepdims=True)                    # (TB, 1)

    # --- finalize: log-likelihood -> probability ------------------------------
    @pl.when(ni == pl.num_programs(1) - 1)
    def _finalize():
        estimate = acc_sc[...]                       # 1/N and kde_norm folded in bias
        # +1e-300 underflows to 0 in f32, matching torch float32 semantics.
        score = jnp.log(estimate + jnp.float32(1e-300))
        out_ref[...] = 1.0 / (1.0 + jnp.exp(0.05 * (score - 12.0)))


def dfkde_forward(features, pca_mean, singular_vectors, max_length,
                  bw_transform, kde_dataset, kde_norm,
                  *, batch_tile=8, n_tile=256):
    """Runs the DFKDE (eval-mode) forward pass. Returns probabilities (B,)."""
    B, D = features.shape
    P = singular_vectors.shape[1]
    N = kde_dataset.shape[0]

    # ---- static (model-load-time) precompute ---------------------------------
    m = (singular_vectors @ bw_transform) / max_length                      # (D, P)
    mean_proj = pca_mean @ m                                                # (1, P)
    d2 = jnp.sum(kde_dataset * kde_dataset, axis=1)                         # (N,)
    bias = (-0.5 * d2 + jnp.log(kde_norm)
            - jnp.log(jnp.float32(N))).reshape(1, N)                        # (1, N)

    # ---- pad batch to sublane tile, dataset to lane-tile multiple ------------
    b_pad = (-B) % batch_tile
    n_pad = (-N) % n_tile
    feat_p = jnp.pad(features.astype(jnp.float32), ((0, b_pad), (0, 0)))
    data_p = jnp.pad(kde_dataset.astype(jnp.float32), ((0, n_pad), (0, 0)))
    # padded dataset rows contribute exp(-1e30) == 0
    bias_p = jnp.pad(bias.astype(jnp.float32), ((0, 0), (0, n_pad)),
                     constant_values=-1e30)
    BP, NP_ = B + b_pad, N + n_pad
    grid = (BP // batch_tile, NP_ // n_tile)

    cost = pl.CostEstimate(
        flops=2 * BP * D * P + 2 * BP * NP_ * P + 2 * BP * NP_,
        transcendentals=BP * NP_ + 2 * BP,
        bytes_accessed=4 * (BP * D + D * P + 2 * P + NP_ * P + NP_ + BP),
    )

    out = pl.pallas_call(
        dfkde_kernel,
        out_shape=jax.ShapeDtypeStruct((BP, 1), jnp.float32),
        grid_spec=pltpu.PrefetchScalarGridSpec(
            num_scalar_prefetch=0,
            grid=grid,
            in_specs=[
                pl.BlockSpec((batch_tile, D), lambda bi, ni: (bi, 0)),  # features
                pl.BlockSpec((D, P), lambda bi, ni: (0, 0)),            # fused proj M
                pl.BlockSpec((1, P), lambda bi, ni: (0, 0)),            # mean_proj
                pl.BlockSpec((n_tile, P), lambda bi, ni: (ni, 0)),      # kde_dataset tile
                pl.BlockSpec((1, n_tile), lambda bi, ni: (0, ni)),      # bias tile
            ],
            out_specs=pl.BlockSpec((batch_tile, 1), lambda bi, ni: (bi, 0)),
            scratch_shapes=[
                pltpu.VMEM((batch_tile, P), jnp.float32),   # y
                pltpu.VMEM((batch_tile, 1), jnp.float32),   # 0.5*|y|^2
                pltpu.VMEM((batch_tile, 1), jnp.float32),   # partial-sum accumulator
            ],
        ),
        compiler_params=pltpu.CompilerParams(
            dimension_semantics=("parallel", "arbitrary")),
        cost_estimate=cost,
    )(feat_p, m, mean_proj, data_p, bias_p)
    return out[:B, 0]


if __name__ == "__main__":
    # Small deterministic synthetic setup (AST pooler_output would be 768-dim;
    # use D=256 here to keep the test small).
    B, D, P, N = 2, 256, 16, 1024   # batch, feature dim, n_pca_components, KDE points

    key = jax.random.PRNGKey(0)
    k_feat, k_mean, k_vec, k_bw, k_data = jax.random.split(key, 5)

    features = jax.random.normal(k_feat, (B, D), jnp.float32)
    pca_mean = 0.1 * jax.random.normal(k_mean, (1, D), jnp.float32)
    singular_vectors = jax.random.normal(k_vec, (D, P), jnp.float32) / jnp.sqrt(D)
    max_length = jnp.float32(3.5)
    # Cholesky-like (lower-triangular, positive diagonal) bandwidth transform.
    bw_raw = 0.2 * jax.random.normal(k_bw, (P, P), jnp.float32)
    bw_transform = jnp.tril(bw_raw, -1) + jnp.diag(
        1.0 + 0.1 * jnp.arange(P, dtype=jnp.float32))
    kde_dataset = jax.random.normal(k_data, (N, P), jnp.float32)
    # norm = prod(diag(bw_transform)) * (2*pi)^(-P/2), as in GaussianKDE.fit
    kde_norm = jnp.prod(jnp.diag(bw_transform)) * (2.0 * jnp.pi) ** (-P / 2.0)

    probs = dfkde_forward(features, pca_mean, singular_vectors, max_length,
                          bw_transform, kde_dataset, kde_norm,
                          batch_tile=8, n_tile=256)
    probs = jax.block_until_ready(probs)

    # Pure-JAX reference following the original (un-fused) torch math.
    x = (features - pca_mean) @ singular_vectors
    x = x / max_length
    y = x @ bw_transform
    dist = jnp.sum((y[:, None, :] - kde_dataset[None, :, :]) ** 2, axis=-1)
    estimate = jnp.mean(jnp.exp(-0.5 * dist) * kde_norm, axis=1)
    score = jnp.log(estimate + jnp.float32(1e-300))
    ref = 1.0 / (1.0 + jnp.exp(0.05 * (score - 12.0)))

    assert probs.shape == (B,)
    assert bool(jnp.all(jnp.isfinite(probs)))
    assert bool(jnp.all((probs >= 0.0) & (probs <= 1.0)))
    assert bool(jnp.allclose(probs, ref, rtol=1e-4, atol=1e-4)), (probs, ref)
    print("KERNEL_OK")
</pallas_src>

<mosaic_0001>
module attributes {stable_mosaic.version = 11 : i64} {
  func.func @dfkde_kernel(%arg0: i32, %arg1: i32, %arg2: memref<8x256xf32, #tpu.memory_space<vmem>>, %arg3: memref<256x16xf32, #tpu.memory_space<vmem>>, %arg4: memref<1x16xf32, #tpu.memory_space<vmem>>, %arg5: memref<256x16xf32, #tpu.memory_space<vmem>>, %arg6: memref<1x256xf32, #tpu.memory_space<vmem>>, %arg7: memref<8x1xf32, #tpu.memory_space<vmem>>, %arg8: memref<8x16xf32, #tpu.memory_space<vmem>>, %arg9: memref<8x1xf32, #tpu.memory_space<vmem>>, %arg10: memref<8x1xf32, #tpu.memory_space<vmem>>) attributes {dimension_semantics = [#tpu.dimension_semantics<parallel>, #tpu.dimension_semantics<arbitrary>], iteration_bounds = array<i64: 1, 4>, scalar_prefetch = 0 : i64, scratch_operands = 3 : i64, tpu.core_type = #tpu.core_type<tc>, window_params = [{transform_indices = @transform_0, window_bounds = array<i64: 8, 256>}, {pipeline_mode = #tpu.pipeline_mode<synchronous>, transform_indices = @transform_1, window_bounds = array<i64: 256, 16>}, {pipeline_mode = #tpu.pipeline_mode<synchronous>, transform_indices = @transform_2, window_bounds = array<i64: 1, 16>}, {transform_indices = @transform_3, window_bounds = array<i64: 256, 16>}, {transform_indices = @transform_4, window_bounds = array<i64: 1, 256>}, {transform_indices = @transform_5, window_bounds = array<i64: 8, 1>}]} {
    %c0_i32 = arith.constant 0 : i32
    %0 = arith.cmpi eq, %arg1, %c0_i32 : i32
    %1 = arith.extui %0 : i1 to i32
    %c0_i32_0 = arith.constant 0 : i32
    %2 = arith.cmpi ne, %1, %c0_i32_0 : i32
    scf.if %2 {
      %c0_14 = arith.constant 0 : index
      %c0_15 = arith.constant 0 : index
      %21 = vector.load %arg2[%c0_14, %c0_15] : memref<8x256xf32, #tpu.memory_space<vmem>>, vector<8x256xf32>
      %c0_16 = arith.constant 0 : index
      %c0_17 = arith.constant 0 : index
      %22 = vector.load %arg3[%c0_16, %c0_17] : memref<256x16xf32, #tpu.memory_space<vmem>>, vector<256x16xf32>
      %cst_18 = arith.constant dense<0.000000e+00> : vector<8x16xf32>
      %23 = tpu.matmul %21, %22, %cst_18 {dimension_numbers = #tpu.dot_dimension_numbers<[1], [0], [0], [1], [0, 0, 1, 1], [], []>} : vector<8x256xf32>, vector<256x16xf32>, vector<8x16xf32> -> vector<8x16xf32>
      %c0_19 = arith.constant 0 : index
      %c0_20 = arith.constant 0 : index
      %24 = vector.load %arg4[%c0_19, %c0_20] : memref<1x16xf32, #tpu.memory_space<vmem>>, vector<1x16xf32>
      %25 = vector.broadcast %24 : vector<1x16xf32> to vector<8x16xf32>
      %26 = arith.subf %23, %25 : vector<8x16xf32>
      %c0_21 = arith.constant 0 : index
      %c0_22 = arith.constant 0 : index
      %27 = vector.load %arg8[%c0_21, %c0_22] : memref<8x16xf32, #tpu.memory_space<vmem>>, vector<8x16xf32>
      tpu.vector_store %arg8[%c0_21, %c0_22], %26 {strides = array<i32>} : memref<8x16xf32, #tpu.memory_space<vmem>>, vector<8x16xf32>,
      %28 = arith.mulf %26, %26 : vector<8x16xf32>
      %cst_23 = arith.constant dense<0.000000e+00> : vector<8xf32>
      %29 = vector.multi_reduction <add>, %28, %cst_23 [1] : vector<8x16xf32> to vector<8xf32>
      %30 = vector.shape_cast %29 : vector<8xf32> to vector<8x1xf32>
      %cst_24 = arith.constant 5.000000e-01 : f32
      %31 = vector.broadcast %cst_24 : f32 to vector<8x1xf32>
      %32 = arith.mulf %31, %30 : vector<8x1xf32>
      %c0_25 = arith.constant 0 : index
      %c0_26 = arith.constant 0 : index
      %33 = vector.load %arg9[%c0_25, %c0_26] : memref<8x1xf32, #tpu.memory_space<vmem>>, vector<8x1xf32>
      tpu.vector_store %arg9[%c0_25, %c0_26], %32 {strides = array<i32>} : memref<8x1xf32, #tpu.memory_space<vmem>>, vector<8x1xf32>,
      %cst_27 = arith.constant 0.000000e+00 : f32
      %34 = vector.broadcast %cst_27 : f32 to vector<8x1xf32>
      %c0_28 = arith.constant 0 : index
      %c0_29 = arith.constant 0 : index
      %35 = vector.load %arg10[%c0_28, %c0_29] : memref<8x1xf32, #tpu.memory_space<vmem>>, vector<8x1xf32>
      tpu.vector_store %arg10[%c0_28, %c0_29], %34 {strides = array<i32>} : memref<8x1xf32, #tpu.memory_space<vmem>>, vector<8x1xf32>,
    } else {
    }
    %c0 = arith.constant 0 : index
    %c0_1 = arith.constant 0 : index
    %3 = vector.load %arg8[%c0, %c0_1] : memref<8x16xf32, #tpu.memory_space<vmem>>, vector<8x16xf32>
    %c0_2 = arith.constant 0 : index
    %c0_3 = arith.constant 0 : index
    %4 = vector.load %arg5[%c0_2, %c0_3] : memref<256x16xf32, #tpu.memory_space<vmem>>, vector<256x16xf32>
    %cst = arith.constant dense<0.000000e+00> : vector<8x256xf32>
    %5 = tpu.matmul %3, %4, %cst {dimension_numbers = #tpu.dot_dimension_numbers<[1], [1], [0], [0], [0, 0, 1, 0], [], []>} : vector<8x16xf32>, vector<256x16xf32>, vector<8x256xf32> -> vector<8x256xf32>
    %c0_4 = arith.constant 0 : index
    %c0_5 = arith.constant 0 : index
    %6 = vector.load %arg6[%c0_4, %c0_5] : memref<1x256xf32, #tpu.memory_space<vmem>>, vector<1x256xf32>
    %7 = vector.broadcast %6 : vector<1x256xf32> to vector<8x256xf32>
    %8 = arith.addf %5, %7 : vector<8x256xf32>
    %c0_6 = arith.constant 0 : index
    %c0_7 = arith.constant 0 : index
    %9 = vector.load %arg9[%c0_6, %c0_7] : memref<8x1xf32, #tpu.memory_space<vmem>>, vector<8x1xf32>
    %10 = vector.broadcast %9 : vector<8x1xf32> to vector<8x256xf32>
    %11 = arith.subf %8, %10 : vector<8x256xf32>
    %12 = math.exp %11 : vector<8x256xf32>
    %c0_8 = arith.constant 0 : index
    %c0_9 = arith.constant 0 : index
    %13 = vector.load %arg10[%c0_8, %c0_9] : memref<8x1xf32, #tpu.memory_space<vmem>>, vector<8x1xf32>
    %cst_10 = arith.constant dense<0.000000e+00> : vector<8xf32>
    %14 = vector.multi_reduction <add>, %12, %cst_10 [1] : vector<8x256xf32> to vector<8xf32>
    %15 = vector.shape_cast %14 : vector<8xf32> to vector<8x1xf32>
    %16 = arith.addf %13, %15 : vector<8x1xf32>
    %c0_11 = arith.constant 0 : index
    %c0_12 = arith.constant 0 : index
    %17 = vector.load %arg10[%c0_11, %c0_12] : memref<8x1xf32, #tpu.memory_space<vmem>>, vector<8x1xf32>
    tpu.vector_store %arg10[%c0_11, %c0_12], %16 {strides = array<i32>} : memref<8x1xf32, #tpu.memory_space<vmem>>, vector<8x1xf32>,
    %c3_i32 = arith.constant 3 : i32
    %18 = arith.cmpi eq, %arg1, %c3_i32 : i32
    %19 = arith.extui %18 : i1 to i32
    %c0_i32_13 = arith.constant 0 : i32
    %20 = arith.cmpi ne, %19, %c0_i32_13 : i32
    scf.if %20 {
      %c0_14 = arith.constant 0 : index
      %c0_15 = arith.constant 0 : index
      %21 = vector.load %arg10[%c0_14, %c0_15] : memref<8x1xf32, #tpu.memory_space<vmem>>, vector<8x1xf32>
      %cst_16 = arith.constant 0.000000e+00 : f32
      %22 = vector.broadcast %cst_16 : f32 to vector<8x1xf32>
      %23 = arith.addf %21, %22 : vector<8x1xf32>
      %24 = math.log %23 : vector<8x1xf32>
      %cst_17 = arith.constant 1.200000e+01 : f32
      %25 = vector.broadcast %cst_17 : f32 to vector<8x1xf32>
      %26 = arith.subf %24, %25 : vector<8x1xf32>
      %cst_18 = arith.constant 5.000000e-02 : f32
      %27 = vector.broadcast %cst_18 : f32 to vector<8x1xf32>
      %28 = arith.mulf %27, %26 : vector<8x1xf32>
      %29 = math.exp %28 : vector<8x1xf32>
      %cst_19 = arith.constant 1.000000e+00 : f32
      %30 = vector.broadcast %cst_19 : f32 to vector<8x1xf32>
      %31 = arith.addf %30, %29 : vector<8x1xf32>
      %cst_20 = arith.constant 1.000000e+00 : f32
      %32 = vector.broadcast %cst_20 : f32 to vector<8x1xf32>
      %33 = arith.divf %32, %31 : vector<8x1xf32>
      %c0_21 = arith.constant 0 : index
      %c0_22 = arith.constant 0 : index
      %34 = vector.load %arg7[%c0_21, %c0_22] : memref<8x1xf32, #tpu.memory_space<vmem>>, vector<8x1xf32>
      tpu.vector_store %arg7[%c0_21, %c0_22], %33 {strides = array<i32>} : memref<8x1xf32, #tpu.memory_space<vmem>>, vector<8x1xf32>,
    } else {
    }
    return
  }
  func.func @transform_0(%arg0: i32, %arg1: i32) -> (i32, i32) {
    %c0_i32 = arith.constant 0 : i32
    %c0_i32_0 = arith.constant 0 : i32
    return %arg0, %c0_i32 : i32, i32
  }
  func.func @transform_1(%arg0: i32, %arg1: i32) -> (i32, i32) {
    %c0_i32 = arith.constant 0 : i32
    %c0_i32_0 = arith.constant 0 : i32
    %c0_i32_1 = arith.constant 0 : i32
    return %c0_i32, %c0_i32_0 : i32, i32
  }
  func.func @transform_2(%arg0: i32, %arg1: i32) -> (i32, i32) {
    %c0_i32 = arith.constant 0 : i32
    %c0_i32_0 = arith.constant 0 : i32
    %c0_i32_1 = arith.constant 0 : i32
    return %c0_i32, %c0_i32_0 : i32, i32
  }
  func.func @transform_3(%arg0: i32, %arg1: i32) -> (i32, i32) {
    %c0_i32 = arith.constant 0 : i32
    %c0_i32_0 = arith.constant 0 : i32
    return %arg1, %c0_i32 : i32, i32
  }
  func.func @transform_4(%arg0: i32, %arg1: i32) -> (i32, i32) {
    %c0_i32 = arith.constant 0 : i32
    %c0_i32_0 = arith.constant 0 : i32
    return %c0_i32, %arg1 : i32, i32
  }
  func.func @transform_5(%arg0: i32, %arg1: i32) -> (i32, i32) {
    %c0_i32 = arith.constant 0 : i32
    %c0_i32_0 = arith.constant 0 : i32
    return %arg0, %c0_i32 : i32, i32
  }
}

</mosaic_0001>

<llo_original>
// kernel: tpu_custom_call.1
$region0: #{tpu_custom_call.1}
  #allocation0 [shape = 'u32[]', space=smem, size = 0x4, offset = 0x4, fixed_abs, tag = 'smem constant byte address 0x4 - core index']
  #allocation1 [shape = 'u32[144,128]{1,0:T(1,128)}', space=vmem, size = 0x12000, scoped, tag = 'internal scratch']
  #allocation2 [shape = 'f32[8,16]{1,0:T(8,128)}', space=vmem, size = 0x1000, scoped, tag = 'scratch operand']
  #allocation3 [shape = 'f32[8,1]{1,0:T(8,128)}', space=vmem, size = 0x1000, scoped, tag = 'scratch operand']
  #allocation4 [shape = 'f32[8,1]{1,0:T(8,128)}', space=vmem, size = 0x1000, scoped, tag = 'scratch operand']
  %s0 = inlined_call_operand.vmem [shape: f32[8,256], index: 0, kind: input, shape index: {}]
  %s1 = inlined_call_operand.vmem [shape: f32[256,16], index: 1, kind: input, shape index: {}]
  %s2 = inlined_call_operand.vmem [shape: f32[1,16], index: 2, kind: input, shape index: {}]
  %s3 = inlined_call_operand.vmem [shape: f32[1024,16], index: 3, kind: input, shape index: {}]
  %s4 = inlined_call_operand.vmem [shape: f32[1,1024], index: 4, kind: input, shape index: {}]
  %s5 = inlined_call_operand.vmem [shape: f32[8,1], index: 5, kind: output, shape index: {}]
  %s6 = sld [smem:[#allocation0]]
  $region61: #{tpu_custom_call.1} parent=0
    _
  %s8 = ssub.s32 1, %s6
  %s9 = scalar_select 0, %s8, %s6
  loop: start=0, step=1, limit=6
  $region2: #{tpu_custom_call.1} parent=0 // loop_pre_header
    _
  $region3: #{tpu_custom_call.1} parent=0 // loop_header
    %s11 = sphi 0, %s15
    %p12 = scmp.ge.s32.totalorder %s11, 6
    %s18 = sphi 0, %s30
    %s19 = sphi 0, %s26
    %s20 = sphi 0, %s18
    %s21 = sphi 0, %s19
    %s22 = sphi 0, %s20
    %s23 = sphi 0, %s21
    %s33 = sphi 0, %s35
    %s36 = sphi 0, %s33
    %s37 = sphi 0, %s36
    %s53 = sphi 0, %s37
    %s57 = sphi 0, %s57
    %s59 = sphi 0, %s57
    %s60 = sphi 0, %s59
    %s74 = sphi 0, %s60
    %s78 = sphi 0, %s78
    %s80 = sphi 0, %s78
    %s81 = sphi 0, %s80
    %s95 = sphi 0, %s81
    %s101 = sphi 0, %s103
    %s104 = sphi 0, %s101
    %s105 = sphi 0, %s104
    %s121 = sphi 0, %s105
    %s127 = sphi 0, %s129
    %s130 = sphi 0, %s127
    %s131 = sphi 0, %s130
    %s147 = sphi 0, %s131
    %s153 = sphi 0, %s155
    %s156 = sphi 0, %s153
    %s157 = sphi 0, %s156
    %s173 = sphi 0, %s157
  $region4: #{tpu_custom_call.1} parent=0 // loop_header_branch
    %14 = sbr.rel (%p12) target = $region8
  $region5: #{tpu_custom_call.1} parent=0 // loop_body
    %s16 = ssub.s32 %s11, 1
    %s17 = ssub.s32 %s11, 2
    %s24 = sadd.s32 1, %s19
    %p25 = scmp.ge.s32.totalorder %s24, 4
    %s26 = scalar_select %p25, 0, %s24
    %s27 = sadd.s32 1, %s18
    %s28 = scalar_select %p25, %s27, %s18
    %p29 = scmp.ge.s32.totalorder %s28, 1
    %s30 = scalar_select %p29, 0, %s28
    %s31 = ssub.s32 %s18, %s30
    %p32 = scmp.eq.s32.totalorder %s31, 0
    %s34 = sadd.s32 %s33, 1
    %s35 = scalar_select %p32, %s33, %s34
    %p38 = pneg %p32
    %p39 = scmp.eq.s32.totalorder %s11, 3
    %p40 = por %p38, %p39
    %p41 = scmp.ne.s32.totalorder %s33, %s36
    %p42 = scmp.eq.s32.totalorder %s11, 0
    %p43 = por %p41, %p42
    %p44 = scmp.ne.s32.totalorder %s33, %s36
    %p45 = scmp.eq.s32.totalorder %s16, 3
    %p46 = por %p44, %p45
    %p47 = scmp.ne.s32.totalorder %s36, %s37
    %p48 = scmp.eq.s32.totalorder %s16, 0
    %p49 = por %p47, %p48
    %p50 = scmp.ne.s32.totalorder %s36, %s37
    %p51 = scmp.eq.s32.totalorder %s17, 3
    %p52 = por %p50, %p51
    %p54 = scmp.ne.s32.totalorder %s37, %s53
    %p55 = scmp.eq.s32.totalorder %s17, 0
    %p56 = por %p54, %p55
    %s58 = sadd.s32 %s57, 1
    %p61 = scmp.eq.s32.totalorder %s11, 3
    %p62 = scmp.ne.s32.totalorder %s57, %s59
    %p63 = scmp.eq.s32.totalorder %s11, 0
    %p64 = por %p62, %p63
    %p65 = scmp.ne.s32.totalorder %s57, %s59
    %p66 = scmp.eq.s32.totalorder %s16, 3
    %p67 = por %p65, %p66
    %p68 = scmp.ne.s32.totalorder %s59, %s60
    %p69 = scmp.eq.s32.totalorder %s16, 0
    %p70 = por %p68, %p69
    %p71 = scmp.ne.s32.totalorder %s59, %s60
    %p72 = scmp.eq.s32.totalorder %s17, 3
    %p73 = por %p71, %p72
    %p75 = scmp.ne.s32.totalorder %s60, %s74
    %p76 = scmp.eq.s32.totalorder %s17, 0
    %p77 = por %p75, %p76
    %s79 = sadd.s32 %s78, 1
    %p82 = scmp.eq.s32.totalorder %s11, 3
    %p83 = scmp.ne.s32.totalorder %s78, %s80
    %p84 = scmp.eq.s32.totalorder %s11, 0
    %p85 = por %p83, %p84
    %p86 = scmp.ne.s32.totalorder %s78, %s80
    %p87 = scmp.eq.s32.totalorder %s16, 3
    %p88 = por %p86, %p87
    %p89 = scmp.ne.s32.totalorder %s80, %s81
    %p90 = scmp.eq.s32.totalorder %s16, 0
    %p91 = por %p89, %p90
    %p92 = scmp.ne.s32.totalorder %s80, %s81
    %p93 = scmp.eq.s32.totalorder %s17, 3
    %p94 = por %p92, %p93
    %p96 = scmp.ne.s32.totalorder %s81, %s95
    %p97 = scmp.eq.s32.totalorder %s17, 0
    %p98 = por %p96, %p97
    %s99 = ssub.s32 %s19, %s26
    %p100 = scmp.eq.s32.totalorder %s99, 0
    %s102 = sadd.s32 %s101, 1
    %s103 = scalar_select %p100, %s101, %s102
    %p106 = pneg %p100
    %p107 = scmp.eq.s32.totalorder %s11, 3
    %p108 = por %p106, %p107
    %p109 = scmp.ne.s32.totalorder %s101, %s104
    %p110 = scmp.eq.s32.totalorder %s11, 0
    %p111 = por %p109, %p110
    %p112 = scmp.ne.s32.totalorder %s101, %s104
    %p113 = scmp.eq.s32.totalorder %s16, 3
    %p114 = por %p112, %p113
    %p115 = scmp.ne.s32.totalorder %s104, %s105
    %p116 = scmp.eq.s32.totalorder %s16, 0
    %p117 = por %p115, %p116
    %p118 = scmp.ne.s32.totalorder %s104, %s105
    %p119 = scmp.eq.s32.totalorder %s17, 3
    %p120 = por %p118, %p119
    %p122 = scmp.ne.s32.totalorder %s105, %s121
    %p123 = scmp.eq.s32.totalorder %s17, 0
    %p124 = por %p122, %p123
    %s125 = ssub.s32 %s19, %s26
    %p126 = scmp.eq.s32.totalorder %s125, 0
    %s128 = sadd.s32 %s127, 1
    %s129 = scalar_select %p126, %s127, %s128
    %p132 = pneg %p126
    %p133 = scmp.eq.s32.totalorder %s11, 3
    %p134 = por %p132, %p133
    %p135 = scmp.ne.s32.totalorder %s127, %s130
    %p136 = scmp.eq.s32.totalorder %s11, 0
    %p137 = por %p135, %p136
    %p138 = scmp.ne.s32.totalorder %s127, %s130
    %p139 = scmp.eq.s32.totalorder %s16, 3
    %p140 = por %p138, %p139
    %p141 = scmp.ne.s32.totalorder %s130, %s131
    %p142 = scmp.eq.s32.totalorder %s16, 0
    %p143 = por %p141, %p142
    %p144 = scmp.ne.s32.totalorder %s130, %s131
    %p145 = scmp.eq.s32.totalorder %s17, 3
    %p146 = por %p144, %p145
    %p148 = scmp.ne.s32.totalorder %s131, %s147
    %p149 = scmp.eq.s32.totalorder %s17, 0
    %p150 = por %p148, %p149
    %s151 = ssub.s32 %s18, %s30
    %p152 = scmp.eq.s32.totalorder %s151, 0
    %s154 = sadd.s32 %s153, 1
    %s155 = scalar_select %p152, %s153, %s154
    %p158 = pneg %p152
    %p159 = scmp.eq.s32.totalorder %s11, 3
    %p160 = por %p158, %p159
    %p161 = scmp.ne.s32.totalorder %s153, %s156
    %p162 = scmp.eq.s32.totalorder %s11, 0
    %p163 = por %p161, %p162
    %p164 = scmp.ne.s32.totalorder %s153, %s156
    %p165 = scmp.eq.s32.totalorder %s16, 3
    %p166 = por %p164, %p165
    %p167 = scmp.ne.s32.totalorder %s156, %s157
    %p168 = scmp.eq.s32.totalorder %s16, 0
    %p169 = por %p167, %p168
    %p170 = scmp.ne.s32.totalorder %s156, %s157
    %p171 = scmp.eq.s32.totalorder %s17, 3
    %p172 = por %p170, %p171
    %p174 = scmp.ne.s32.totalorder %s157, %s173
    %p175 = scmp.eq.s32.totalorder %s17, 0
    %p176 = por %p174, %p175
    %p177 = scmp.le.s32.totalorder 1, %s11
    %p178 = scmp.lt.s32.totalorder %s11, 5
    %p179 = pnand %p177, %p178
    %p180 = pneg %p179
    // Predicated region
    $region9: #{tpu_custom_call.1} parent=5 // pred_check
      _
    $region10: #{tpu_custom_call.1} parent=5 // pred_check_branch
      %182 = sbr.rel (%p179) target = $region12
    $region11: #{tpu_custom_call.1} parent=5 // pred_region
      %s183 = ssub.s32 %s11, 1
      // Predicated region
      $region13: #{tpu_custom_call.1} parent=11 // pred_check
        %p184 = pneg %p49
      $region14: #{tpu_custom_call.1} parent=11 // pred_check_branch
        %186 = sbr.rel (%p184) target = $region16
      $region15: #{tpu_custom_call.1} parent=11 // pred_region
        %p187 = scmp.lt.s32.totalorder %s20, 0
        %s188 = scalar_select %p187, %s20, 0
        %s189 = smul.addr %s188, 2
        %s190 = smul.addr %s189, 8
        %s191 = scalar_lea.vmem %s0, %s190
      $region16: #{tpu_custom_call.1} parent=11 // pred_fallthru
        _
      // Predicated region
      $region17: #{tpu_custom_call.1} parent=11 // pred_check
        %p192 = pneg %p70
      $region18: #{tpu_custom_call.1} parent=11 // pred_check_branch
        %194 = sbr.rel (%p192) target = $region20
      $region19: #{tpu_custom_call.1} parent=11 // pred_region
        _
      $region20: #{tpu_custom_call.1} parent=11 // pred_fallthru
        _
      // Predicated region
      $region21: #{tpu_custom_call.1} parent=11 // pred_check
        %p195 = pneg %p91
      $region22: #{tpu_custom_call.1} parent=11 // pred_check_branch
        %197 = sbr.rel (%p195) target = $region24
      $region23: #{tpu_custom_call.1} parent=11 // pred_region
        _
      $region24: #{tpu_custom_call.1} parent=11 // pred_fallthru
        _
    $region12: #{tpu_custom_call.1} parent=5 // pred_fallthru
      _
    %p198 = scmp.lt.s32.totalorder %s11, 4
    // Predicated region
    $region25: #{tpu_custom_call.1} parent=5 // pred_check
      %p199 = pneg %p198
    $region26: #{tpu_custom_call.1} parent=5 // pred_check_branch
      %201 = sbr.rel (%p199) target = $region28
    $region27: #{tpu_custom_call.1} parent=5 // pred_region
      // Predicated region
      $region29: #{tpu_custom_call.1} parent=27 // pred_check
        %p202 = pneg %p111
      $region30: #{tpu_custom_call.1} parent=27 // pred_check_branch
        %204 = sbr.rel (%p202) target = $region32
      $region31: #{tpu_custom_call.1} parent=27 // pred_region
        %s205 = smul.u32 32, %s19
        %p206 = scmp.lt.s32.totalorder %s205, 127
        %s207 = scalar_select %p206, %s205, 127
        %s208 = smul.addr %s207, 8
        %s209 = scalar_lea.vmem %s3, %s208
        %s210 = smul.u32 32, %s19
      $region32: #{tpu_custom_call.1} parent=27 // pred_fallthru
        _
      // Predicated region
      $region33: #{tpu_custom_call.1} parent=27 // pred_check
        %p211 = pneg %p137
      $region34: #{tpu_custom_call.1} parent=27 // pred_check_branch
        %213 = sbr.rel (%p211) target = $region36
      $region35: #{tpu_custom_call.1} parent=27 // pred_region
        %s214 = smul.u32 2, %s19
        %p215 = scmp.lt.s32.totalorder %s214, 7
        %s216 = scalar_select %p215, %s214, 7
        %s217 = scalar_lea.vmem %s4, %s216
        %s218 = smul.u32 2, %s19
      $region36: #{tpu_custom_call.1} parent=27 // pred_fallthru
        _
    $region28: #{tpu_custom_call.1} parent=5 // pred_fallthru
      _
    %p219 = scmp.le.s32.totalorder 1, %s11
    %p220 = scmp.lt.s32.totalorder %s11, 5
    %p221 = pnand %p219, %p220
    %p222 = pneg %p221
    // Predicated region
    $region37: #{tpu_custom_call.1} parent=5 // pred_check
      _
    $region38: #{tpu_custom_call.1} parent=5 // pred_check_branch
      %224 = sbr.rel (%p221) target = $region40
    $region39: #{tpu_custom_call.1} parent=5 // pred_region
      %s225 = ssub.s32 %s11, 1
      %p226 = scmp.lt.s32.totalorder %s20, 0
      %s227 = scalar_select %p226, %s20, 0
      %s228 = smul.addr %s227, 2
      %s229 = smul.addr %s228, 8
      %s230 = scalar_lea.vmem %s0, %s229
      %p231 = pneg %p49
      %p232 = pneg %p46
      %p233 = pneg %p70
      %p234 = pneg %p67
      %p235 = pneg %p91
      %p236 = pneg %p88
      %s237 = smul.u32 32, %s21
      %p238 = scmp.lt.s32.totalorder %s237, 127
      %s239 = scalar_select %p238, %s237, 127
      %s240 = smul.addr %s239, 8
      %s241 = scalar_lea.vmem %s3, %s240
      %p242 = pneg %p117
      %p243 = pneg %p114
      %s244 = smul.u32 2, %s21
      %p245 = scmp.lt.s32.totalorder %s244, 7
      %s246 = scalar_select %p245, %s244, 7
      %s247 = scalar_lea.vmem %s4, %s246
      %p248 = pneg %p143
      %p249 = pneg %p140
      %p250 = pneg %p169
      %p251 = pneg %p166
      %p252 = scmp.lt.s32.totalorder %s20, 0
      %s253 = scalar_select %p252, %s20, 0
      %s254 = smul.addr %s253, 8
      %s255 = scalar_lea.vmem %s5, %s254
      %p256 = scmp.lt.s32.totalorder %s20, 0
      %s257 = scalar_select %p256, %s20, 0
      %s258 = smul.addr %s257, 2
      %s259 = smul.addr %s258, 8
      %s260 = scalar_lea.vmem %s0, %s259
      %s261 = smul.u32 32, %s21
      %p262 = scmp.lt.s32.totalorder %s261, 127
      %s263 = scalar_select %p262, %s261, 127
      %s264 = smul.addr %s263, 8
      %s265 = scalar_lea.vmem %s3, %s264
      %s266 = smul.u32 32, %s21
      %s267 = smul.u32 2, %s21
      %p268 = scmp.lt.s32.totalorder %s267, 7
      %s269 = scalar_select %p268, %s267, 7
      %s270 = scalar_lea.vmem %s4, %s269
      %s271 = smul.u32 2, %s21
      %p272 = scmp.lt.s32.totalorder %s20, 0
      %s273 = scalar_select %p272, %s20, 0
      %s274 = smul.addr %s273, 8
      %s275 = scalar_lea.vmem %s5, %s274
      %p276 = scmp.eq.s32.totalorder %s21, 0
      // Predicated region
      $region41: #{tpu_custom_call.1} parent=39 // pred_check
        %p277 = pneg %p276
      $region42: #{tpu_custom_call.1} parent=39 // pred_check_branch
        %279 = sbr.rel (%p277) target = $region44
      $region43: #{tpu_custom_call.1} parent=39 // pred_region
        %v280 = vld [vmem:[%s260] sm:$0xff]
        %v281 = vld [vmem:[%s260 + $0x8] sm:$0xff]
        %v282 = vld [vmem:[%s1] sm:$0xff]
        %v283 = vld [vmem:[%s1 + $0x8] sm:$0xff]
        %v284 = vld [vmem:[%s1 + $0x10] sm:$0xff]
        %v285 = vld [vmem:[%s1 + $0x18] sm:$0xff]
        %v286 = vld [vmem:[%s1 + $0x20] sm:$0xff]
        %v287 = vld [vmem:[%s1 + $0x28] sm:$0xff]
        %v288 = vld [vmem:[%s1 + $0x30] sm:$0xff]
        %v289 = vld [vmem:[%s1 + $0x38] sm:$0xff]
        %v290 = vld [vmem:[%s1 + $0x40] sm:$0xff]
        %v291 = vld [vmem:[%s1 + $0x48] sm:$0xff]
        %v292 = vld [vmem:[%s1 + $0x50] sm:$0xff]
        %v293 = vld [vmem:[%s1 + $0x58] sm:$0xff]
        %v294 = vld [vmem:[%s1 + $0x60] sm:$0xff]
        %v295 = vld [vmem:[%s1 + $0x68] sm:$0xff]
        %v296 = vld [vmem:[%s1 + $0x70] sm:$0xff]
        %v297 = vld [vmem:[%s1 + $0x78] sm:$0xff]
        %v298 = vld [vmem:[%s1 + $0x80] sm:$0xff]
        %v299 = vld [vmem:[%s1 + $0x88] sm:$0xff]
        %v300 = vld [vmem:[%s1 + $0x90] sm:$0xff]
        %v301 = vld [vmem:[%s1 + $0x98] sm:$0xff]
        %v302 = vld [vmem:[%s1 + $0xa0] sm:$0xff]
        %v303 = vld [vmem:[%s1 + $0xa8] sm:$0xff]
        %v304 = vld [vmem:[%s1 + $0xb0] sm:$0xff]
        %v305 = vld [vmem:[%s1 + $0xb8] sm:$0xff]
        %v306 = vld [vmem:[%s1 + $0xc0] sm:$0xff]
        %v307 = vld [vmem:[%s1 + $0xc8] sm:$0xff]
        %v308 = vld [vmem:[%s1 + $0xd0] sm:$0xff]
        %v309 = vld [vmem:[%s1 + $0xd8] sm:$0xff]
        %v310 = vld [vmem:[%s1 + $0xe0] sm:$0xff]
        %v311 = vld [vmem:[%s1 + $0xe8] sm:$0xff]
        %v312 = vld [vmem:[%s1 + $0xf0] sm:$0xff]
        %v313 = vld [vmem:[%s1 + $0xf8] sm:$0xff]
        %314 = vmatprep.subr.mxu0 0.0
        %315 = vmatpush1.msra.mxu0 %v282
        %316 = vmatprep.subr.mxu0 0.0
        %317 = vmatpush1.msra.mxu0 %v283
        %318 = vmatprep.subr.mxu0 0.0
        %319 = vmatpush1.msra.mxu0 %v284
        %320 = vmatprep.subr.mxu0 0.0
        %321 = vmatpush1.msra.mxu0 %v285
        %322 = vmatprep.subr.mxu0 0.0
        %323 = vmatpush1.msra.mxu0 %v286
        %324 = vmatprep.subr.mxu0 0.0
        %325 = vmatpush1.msra.mxu0 %v287
        %326 = vmatprep.subr.mxu0 0.0
        %327 = vmatpush1.msra.mxu0 %v288
        %328 = vmatprep.subr.mxu0 0.0
        %329 = vmatpush1.msra.mxu0 %v289
        %330 = vmatprep.subr.mxu0 0.0
        %331 = vmatpush1.msra.mxu0 %v290
        %332 = vmatprep.subr.mxu0 0.0
        %333 = vmatpush1.msra.mxu0 %v291
        %334 = vmatprep.subr.mxu0 0.0
        %335 = vmatpush1.msra.mxu0 %v292
        %336 = vmatprep.subr.mxu0 0.0
        %337 = vmatpush1.msra.mxu0 %v293
        %338 = vmatprep.subr.mxu0 0.0
        %339 = vmatpush1.msra.mxu0 %v294
        %340 = vmatprep.subr.mxu0 0.0
        %341 = vmatpush1.msra.mxu0 %v295
        %342 = vmatprep.subr.mxu0 0.0
        %343 = vmatpush1.msra.mxu0 %v296
        %344 = vmatprep.subr.mxu0 0.0
        %345 = vmatpush1.msra.mxu0 %v297
        %346 = vmatprep.subr.mxu0 0.0
        %347 = vmatpush1.msra.mxu0 %v298
        %348 = vmatprep.subr.mxu0 0.0
        %349 = vmatpush1.msra.mxu0 %v299
        %350 = vmatprep.subr.mxu0 0.0
        %351 = vmatpush1.msra.mxu0 %v300
        %352 = vmatprep.subr.mxu0 0.0
        %353 = vmatpush1.msra.mxu0 %v301
        %354 = vmatprep.subr.mxu0 0.0
        %355 = vmatpush1.msra.mxu0 %v302
        %356 = vmatprep.subr.mxu0 0.0
        %357 = vmatpush1.msra.mxu0 %v303
        %358 = vmatprep.subr.mxu0 0.0
        %359 = vmatpush1.msra.mxu0 %v304
        %360 = vmatprep.subr.mxu0 0.0
        %361 = vmatpush1.msra.mxu0 %v305
        %362 = vmatprep.subr.mxu0 0.0
        %363 = vmatpush1.msra.mxu0 %v306
        %364 = vmatprep.subr.mxu0 0.0
        %365 = vmatpush1.msra.mxu0 %v307
        %366 = vmatprep.subr.mxu0 0.0
        %367 = vmatpush1.msra.mxu0 %v308
        %368 = vmatprep.subr.mxu0 0.0
        %369 = vmatpush1.msra.mxu0 %v309
        %370 = vmatprep.subr.mxu0 0.0
        %371 = vmatpush1.msra.mxu0 %v310
        %372 = vmatprep.subr.mxu0 0.0
        %373 = vmatpush1.msra.mxu0 %v311
        %374 = vmatprep.subr.mxu0 0.0
        %375 = vmatpush1.msra.mxu0 %v312
        %376 = vmatprep.subr.mxu0 0.0
        %377 = vmatpush1.msra.mxu0 %v313
        %378 = vmatprep.mubr.f32.mxu0 %v281
        %379 = vmatmul.mubr.f32.gmra.mrb[0].mxu0 %v280
        %v380 = vpop.f32.mrb[0].mxu0
        %v381 = vadd.f32 0.0, %v380
        %v382 = vpop.f32.mrb[0].mxu0
        %383 = vdwg.mxu0
        %v384 = vld [vmem:[%s2] sm:$0x1]
        %v386 = vlaneseq
        %v387 = vshrl.u32 %v386, 7
        %v388 = vsub.s32 0, %v387
        %v389 = vrot.slane %v384, %v388
        %v391 = vsub.f32 %v381, %v389
        %vm392 = vcmask 130048
        %393 = vst.msk [vmem:[#allocation2] sm:$0xff] %vm392, %v391
        %v394 = vmul.f32 %v391, %v391
        %v395 = vsel %vm392, %v394, 0.0
        %396 = vadd.xlane.f32.xlu0 %v395
        %v397 = vpop.xlane.xlu0 %396
        %v398 = vmul.f32 %v397, 0.5
        %vm399 = vcmask 7168
        %400 = vst.msk [vmem:[#allocation3] sm:$0xff] %vm399, %v398
        %401 = vst.msk [vmem:[#allocation4] sm:$0xff] %vm399, 0.0
      $region44: #{tpu_custom_call.1} parent=39 // pred_fallthru
        _
      %v402 = vld [vmem:[#allocation2] sm:$0xff]
      %v403 = vld [vmem:[%s265] sm:$0xff]
      %v404 = vld [vmem:[%s265 + $0x8] sm:$0xff]
      %v405 = vld [vmem:[%s265 + $0x10] sm:$0xff]
      %v406 = vld [vmem:[%s265 + $0x18] sm:$0xff]
      %v407 = vld [vmem:[%s265 + $0x20] sm:$0xff]
      %v408 = vld [vmem:[%s265 + $0x28] sm:$0xff]
      %v409 = vld [vmem:[%s265 + $0x30] sm:$0xff]
      %v410 = vld [vmem:[%s265 + $0x38] sm:$0xff]
      %v411 = vld [vmem:[%s265 + $0x40] sm:$0xff]
      %v412 = vld [vmem:[%s265 + $0x48] sm:$0xff]
      %v413 = vld [vmem:[%s265 + $0x50] sm:$0xff]
      %v414 = vld [vmem:[%s265 + $0x58] sm:$0xff]
      %v415 = vld [vmem:[%s265 + $0x60] sm:$0xff]
      %v416 = vld [vmem:[%s265 + $0x68] sm:$0xff]
      %v417 = vld [vmem:[%s265 + $0x70] sm:$0xff]
      %v418 = vld [vmem:[%s265 + $0x78] sm:$0xff]
      %v419 = vld [vmem:[%s265 + $0x80] sm:$0xff]
      %v420 = vld [vmem:[%s265 + $0x88] sm:$0xff]
      %v421 = vld [vmem:[%s265 + $0x90] sm:$0xff]
      %v422 = vld [vmem:[%s265 + $0x98] sm:$0xff]
      %v423 = vld [vmem:[%s265 + $0xa0] sm:$0xff]
      %v424 = vld [vmem:[%s265 + $0xa8] sm:$0xff]
      %v425 = vld [vmem:[%s265 + $0xb0] sm:$0xff]
      %v426 = vld [vmem:[%s265 + $0xb8] sm:$0xff]
      %v427 = vld [vmem:[%s265 + $0xc0] sm:$0xff]
      %v428 = vld [vmem:[%s265 + $0xc8] sm:$0xff]
      %v429 = vld [vmem:[%s265 + $0xd0] sm:$0xff]
      %v430 = vld [vmem:[%s265 + $0xd8] sm:$0xff]
      %v431 = vld [vmem:[%s265 + $0xe0] sm:$0xff]
      %v432 = vld [vmem:[%s265 + $0xe8] sm:$0xff]
      %v433 = vld [vmem:[%s265 + $0xf0] sm:$0xff]
      %v434 = vld [vmem:[%s265 + $0xf8] sm:$0xff]
      %v435 = vld [vmem:[%s270] sm:$0x3]
      %v437 = vlaneseq
      %v438 = vshrl.u32 %v437, 7
      %v439 = vsub.s32 0, %v438
      %v440 = vrot.slane %v435, %v439
      %v441 = vlaneseq
      %v442 = vshrl.u32 %v441, 7
      %v443 = vsub.s32 1, %v442
      %v444 = vrot.slane %v435, %v443
      %vm447 = vcmask 130048
      %v449 = vsel %vm447, %v402, 0
      %v452 = vsel %vm447, %v403, 0
      %v455 = vsel %vm447, %v404, 0
      %v458 = vsel %vm447, %v405, 0
      %v461 = vsel %vm447, %v406, 0
      %v464 = vsel %vm447, %v407, 0
      %v467 = vsel %vm447, %v408, 0
      %v470 = vsel %vm447, %v409, 0
      %v473 = vsel %vm447, %v410, 0
      %v476 = vsel %vm447, %v411, 0
      %v479 = vsel %vm447, %v412, 0
      %v482 = vsel %vm447, %v413, 0
      %v485 = vsel %vm447, %v414, 0
      %v488 = vsel %vm447, %v415, 0
      %v491 = vsel %vm447, %v416, 0
      %v494 = vsel %vm447, %v417, 0
      %v497 = vsel %vm447, %v418, 0
      %v500 = vsel %vm447, %v419, 0
      %v503 = vsel %vm447, %v420, 0
      %v506 = vsel %vm447, %v421, 0
      %v509 = vsel %vm447, %v422, 0
      %v512 = vsel %vm447, %v423, 0
      %v515 = vsel %vm447, %v424, 0
      %v518 = vsel %vm447, %v425, 0
      %v521 = vsel %vm447, %v426, 0
      %v524 = vsel %vm447, %v427, 0
      %v527 = vsel %vm447, %v428, 0
      %v530 = vsel %vm447, %v429, 0
      %v533 = vsel %vm447, %v430, 0
      %v536 = vsel %vm447, %v431, 0
      %v539 = vsel %vm447, %v432, 0
      %v542 = vsel %vm447, %v433, 0
      %v545 = vsel %vm447, %v434, 0
      %547 = vmatprep.subr.mxu0 0.0
      %548 = vmatpush1.xpose.msra.mxu0 %v452
      %549 = vmatprep.subr.mxu0 0.0
      %550 = vmatpush1.xpose.msra.mxu0 %v455
      %551 = vmatprep.subr.mxu0 0.0
      %552 = vmatpush1.xpose.msra.mxu0 %v458
      %553 = vmatprep.subr.mxu0 0.0
      %554 = vmatpush1.xpose.msra.mxu0 %v461
      %555 = vmatprep.subr.mxu0 0.0
      %556 = vmatpush1.xpose.msra.mxu0 %v464
      %557 = vmatprep.subr.mxu0 0.0
      %558 = vmatpush1.xpose.msra.mxu0 %v467
      %559 = vmatprep.subr.mxu0 0.0
      %560 = vmatpush1.xpose.msra.mxu0 %v470
      %561 = vmatprep.subr.mxu0 0.0
      %562 = vmatpush1.xpose.msra.mxu0 %v473
      %563 = vmatprep.subr.mxu0 0.0
      %564 = vmatpush1.xpose.msra.mxu0 %v476
      %565 = vmatprep.subr.mxu0 0.0
      %566 = vmatpush1.xpose.msra.mxu0 %v479
      %567 = vmatprep.subr.mxu0 0.0
      %568 = vmatpush1.xpose.msra.mxu0 %v482
      %569 = vmatprep.subr.mxu0 0.0
      %570 = vmatpush1.xpose.msra.mxu0 %v485
      %571 = vmatprep.subr.mxu0 0.0
      %572 = vmatpush1.xpose.msra.mxu0 %v488
      %573 = vmatprep.subr.mxu0 0.0
      %574 = vmatpush1.xpose.msra.mxu0 %v491
      %575 = vmatprep.subr.mxu0 0.0
      %576 = vmatpush1.xpose.msra.mxu0 %v494
      %577 = vmatprep.subr.mxu0 0.0
      %578 = vmatpush1.xpose.msra.mxu0 %v497
      %579 = vmatprep.subr.mxu0 0.0
      %580 = vmatpush1.xpose.msra.mxu0 %v500
      %581 = vmatprep.subr.mxu0 0.0
      %582 = vmatpush1.xpose.msra.mxu0 %v503
      %583 = vmatprep.subr.mxu0 0.0
      %584 = vmatpush1.xpose.msra.mxu0 %v506
      %585 = vmatprep.subr.mxu0 0.0
      %586 = vmatpush1.xpose.msra.mxu0 %v509
      %587 = vmatprep.subr.mxu0 0.0
      %588 = vmatpush1.xpose.msra.mxu0 %v512
      %589 = vmatprep.subr.mxu0 0.0
      %590 = vmatpush1.xpose.msra.mxu0 %v515
      %591 = vmatprep.subr.mxu0 0.0
      %592 = vmatpush1.xpose.msra.mxu0 %v518
      %593 = vmatprep.subr.mxu0 0.0
      %594 = vmatpush1.xpose.msra.mxu0 %v521
      %595 = vmatprep.subr.mxu0 0.0
      %596 = vmatpush1.xpose.msra.mxu0 %v524
      %597 = vmatprep.subr.mxu0 0.0
      %598 = vmatpush1.xpose.msra.mxu0 %v527
      %599 = vmatprep.subr.mxu0 0.0
      %600 = vmatpush1.xpose.msra.mxu0 %v530
      %601 = vmatprep.subr.mxu0 0.0
      %602 = vmatpush1.xpose.msra.mxu0 %v533
      %603 = vmatprep.subr.mxu0 0.0
      %604 = vmatpush1.xpose.msra.mxu0 %v536
      %605 = vmatprep.subr.mxu0 0.0
      %606 = vmatpush1.xpose.msra.mxu0 %v539
      %607 = vmatprep.subr.mxu0 0.0
      %608 = vmatpush1.xpose.msra.mxu0 %v542
      %609 = vmatprep.subr.mxu0 0.0
      %610 = vmatpush1.xpose.msra.mxu0 %v545
      %611 = vmatprep.mubr.f32.mxu0 0.0
      %612 = vmatmul.mubr.f32.gmra.mrb[0].mxu0 %v449
      %v613 = vpop.f32.mrb[0].mxu0
      %v614 = vadd.f32 %v440, %v613
      %v615 = vpop.f32.mrb[0].mxu0
      %v616 = vadd.f32 %v444, %v615
      %617 = vdwg.mxu0
      %v618 = vld [vmem:[#allocation3] sm:$0xff]
      %620 = vset.pattern.permute.xlu0 0
      %621 = vperm.xlu0 %620, %v618
      %v622 = vpop.permute.xlu0 %621
      %v624 = vsub.f32 %v614, %v622
      %v625 = vsub.f32 %v616, %v622
      %v626 = vmul.f32 %v624, 1.442695
      %v627 = vpow.pop %v626
      %v628 = vmul.f32 %v625, 1.442695
      %v629 = vpow.pop %v628
      %v630 = vld [vmem:[#allocation4] sm:$0xff]
      %v631 = vadd.f32 %v627, %v629
      %632 = vadd.xlane.f32.xlu0 %v631
      %v633 = vpop.xlane.xlu0 %632
      %v634 = vadd.f32 %v630, %v633
      %vm635 = vcmask 7168
      %636 = vst.msk [vmem:[#allocation4] sm:$0xff] %vm635, %v634
      %p637 = scmp.eq.s32.totalorder %s21, 3
      // Predicated region
      $region45: #{tpu_custom_call.1} parent=39 // pred_check
        %p638 = pneg %p637
      $region46: #{tpu_custom_call.1} parent=39 // pred_check_branch
        %640 = sbr.rel (%p638) target = $region48
      $region47: #{tpu_custom_call.1} parent=39 // pred_region
        %v641 = vld [vmem:[#allocation4] sm:$0xff]
        %v642 = vadd.f32 %v641, 0.0
        %v643 = vlog2.pop %v642
        %v644 = vmul.f32 %v643, 0.6931472
        %v645 = vsub.f32 %v644, 12.0
        %v646 = vmul.f32 %v645, 0.05
        %v647 = vmul.f32 %v646, 1.442695
        %v648 = vpow.pop %v647
        %v649 = vadd.f32 %v648, 1.0
        %v650 = vrcp.pop %v649
        %v651 = vmul.f32 1.0, %v650
        %652 = vst.msk [vmem:[%s275] sm:$0xff] %vm635, %v651
      $region48: #{tpu_custom_call.1} parent=39 // pred_fallthru
        _
      %p653 = scmp.lt.s32.totalorder %s20, 0
      %s654 = scalar_select %p653, %s20, 0
      %s655 = smul.addr %s654, 8
      %s656 = scalar_lea.vmem %s5, %s655
      // Predicated region
      $region49: #{tpu_custom_call.1} parent=39 // pred_check
        %p657 = pneg %p166
      $region50: #{tpu_custom_call.1} parent=39 // pred_check_branch
        %659 = sbr.rel (%p657) target = $region52
      $region51: #{tpu_custom_call.1} parent=39 // pred_region
        _
      $region52: #{tpu_custom_call.1} parent=39 // pred_fallthru
        _
      // Predicated region
      $region53: #{tpu_custom_call.1} parent=39 // pred_check
        %p660 = pneg %p166
      $region54: #{tpu_custom_call.1} parent=39 // pred_check_branch
        %662 = sbr.rel (%p660) target = $region56
      $region55: #{tpu_custom_call.1} parent=39 // pred_region
        %p663 = scmp.lt.s32.totalorder %s20, 0
        %s664 = scalar_select %p663, %s20, 0
        %s665 = smul.addr %s664, 8
        %s666 = scalar_lea.vmem %s5, %s665
      $region56: #{tpu_custom_call.1} parent=39 // pred_fallthru
        _
    $region40: #{tpu_custom_call.1} parent=5 // pred_fallthru
      _
    %p667 = scmp.le.s32.totalorder 2, %s11
    // Predicated region
    $region57: #{tpu_custom_call.1} parent=5 // pred_check
      %p668 = pneg %p667
    $region58: #{tpu_custom_call.1} parent=5 // pred_check_branch
      %670 = sbr.rel (%p668) target = $region60
    $region59: #{tpu_custom_call.1} parent=5 // pred_region
      %s671 = ssub.s32 %s11, 2
    $region60: #{tpu_custom_call.1} parent=5 // pred_fallthru
      _
  $region6: #{tpu_custom_call.1} parent=0 // loop_footer
    %s15 = sadd.s32 1, %s11
  $region7: #{tpu_custom_call.1} parent=0 // loop_footer_branch
    %10 = sbr.rel target = $region3
  $region8: #{tpu_custom_call.1} parent=0 // loop_exit
    _

</llo_original>
